<compile_context>
chip_gen: v7x
topology: tpu7x:2x2x1
jax: 0.10.0
libtpu: 0.0.40
codegen_flags: <defaults>
</compile_context>

<pallas_src>
import jax
import jax.numpy as jnp
from jax.experimental import pallas as pl
from jax.experimental.pallas import tpu as pltpu


def _copy_kernel(g_ref, out_ref):
    # One lane-dense (block_rows, lane) tile resident in VMEM.
    out_ref[...] = g_ref[...]


_LANE_CANDIDATES = (8192, 4096, 2048, 1024, 512, 256, 128)


def _choose_2d_layout(total):
    """Pick (rows, lane): lane a multiple of 128, prefer rows % 8 == 0."""
    for lane in _LANE_CANDIDATES:
        if total % lane == 0 and (total // lane) % 8 == 0:
            return total // lane, lane
    for lane in _LANE_CANDIDATES:
        if total % lane == 0:
            return total // lane, lane
    return None


def _choose_block_rows(rows, lane, itemsize, max_block_bytes=4 * 1024 * 1024):
    """Largest divisor of `rows` under the per-buffer VMEM cap that keeps
    the (8,128) tiling constraint (multiple of 8, or the full extent)."""
    max_rows = max(1, max_block_bytes // (lane * itemsize))
    for d in range(min(rows, max_rows), 0, -1):
        if rows % d == 0 and (d % 8 == 0 or d == rows):
            return d
    return rows  # single full block (only hit for tiny / odd shapes)


def net_forward(g):
    """Pallas equivalent of Net.forward(g): identity data path."""
    total = g.size
    itemsize = jnp.dtype(g.dtype).itemsize
    layout = _choose_2d_layout(total)

    if layout is None:
        # Element count not a multiple of 128: single whole-array block copy.
        return pl.pallas_call(
            _copy_kernel,
            out_shape=jax.ShapeDtypeStruct(g.shape, g.dtype),
            input_output_aliases={0: 0},
        )(g)

    rows, lane = layout
    block_rows = _choose_block_rows(rows, lane, itemsize)
    grid = (rows // block_rows,)

    g2d = g.reshape(rows, lane)  # reshape-only: same element order, bit-exact
    spec = pl.BlockSpec((block_rows, lane), lambda i: (i, 0))

    out2d = pl.pallas_call(
        _copy_kernel,
        out_shape=jax.ShapeDtypeStruct((rows, lane), g.dtype),
        grid=grid,
        in_specs=[spec],
        out_specs=spec,
        input_output_aliases={0: 0},
        compiler_params=pltpu.CompilerParams(
            dimension_semantics=("parallel",),
        ),
    )(g2d)
    return out2d.reshape(g.shape)


if __name__ == "__main__":
    key = jax.random.PRNGKey(0)
    # Small NCHW input consistent with a conv-style module interface.
    x = jax.random.normal(key, (2, 4, 16, 16), dtype=jnp.float32)

    fwd = jax.jit(net_forward)
    out = jax.block_until_ready(fwd(x))

    # Sanity check against the (identity) reference semantics.
    assert out.shape == x.shape and out.dtype == x.dtype
    assert bool(jnp.all(out == x))

    print("KERNEL_OK")
</pallas_src>

<mosaic_0001>
module attributes {stable_mosaic.version = 11 : i64} {
  func.func @_copy_kernel(%arg0: i32, %arg1: memref<8x256xf32, #tpu.memory_space<vmem>>, %arg2: memref<8x256xf32, #tpu.memory_space<vmem>>) attributes {dimension_semantics = [#tpu.dimension_semantics<parallel>], iteration_bounds = array<i64: 1>, scalar_prefetch = 0 : i64, scratch_operands = 0 : i64, tpu.core_type = #tpu.core_type<tc>, window_params = [{transform_indices = @transform_0, window_bounds = array<i64: 8, 256>}, {transform_indices = @transform_1, window_bounds = array<i64: 8, 256>}]} {
    %c0 = arith.constant 0 : index
    %c0_0 = arith.constant 0 : index
    %0 = vector.load %arg1[%c0, %c0_0] : memref<8x256xf32, #tpu.memory_space<vmem>>, vector<8x256xf32>
    %c0_1 = arith.constant 0 : index
    %c0_2 = arith.constant 0 : index
    %1 = vector.load %arg2[%c0_1, %c0_2] : memref<8x256xf32, #tpu.memory_space<vmem>>, vector<8x256xf32>
    tpu.vector_store %arg2[%c0_1, %c0_2], %0 {strides = array<i32>} : memref<8x256xf32, #tpu.memory_space<vmem>>, vector<8x256xf32>,
    return
  }
  func.func @transform_0(%arg0: i32) -> (i32, i32) {
    %c0_i32 = arith.constant 0 : i32
    %c0_i32_0 = arith.constant 0 : i32
    return %arg0, %c0_i32 : i32, i32
  }
  func.func @transform_1(%arg0: i32) -> (i32, i32) {
    %c0_i32 = arith.constant 0 : i32
    %c0_i32_0 = arith.constant 0 : i32
    return %arg0, %c0_i32 : i32, i32
  }
}

</mosaic_0001>

<llo_original>
// kernel: net_forward.1
$region0: #{net_forward.1}
  #allocation0 [shape = 'u32[]', space=smem, size = 0x4, offset = 0x4, fixed_abs, tag = 'smem constant byte address 0x4 - core index']
  #allocation1 [shape = 'u32[144,128]{1,0:T(1,128)}', space=vmem, size = 0x12000, scoped, tag = 'internal scratch']
  %s0 = inlined_call_operand.vmem [shape: f32[8,256], index: 0, kind: input, shape index: {}, may-alias: {0,1}]
  %s1 = inlined_call_operand.vmem [shape: f32[8,256], index: 1, kind: output, shape index: {}, may-alias: {0,1}]
  %s2 = sld [smem:[#allocation0]]
  $region14: #{net_forward.1} parent=0
    _
  %s4 = ssub.s32 1, %s2
  %s5 = scalar_select 0, %s4, %s2
  // Predicated region
  $region2: #{net_forward.1} parent=0 // pred_check
    _
  $region3: #{net_forward.1} parent=0 // pred_check_branch
    %7 = sbr.rel (0) target = $region5
  $region4: #{net_forward.1} parent=0 // pred_region
    _
  $region5: #{net_forward.1} parent=0 // pred_fallthru
    _
  %v8 = vld [vmem:[%s0] sm:$0xff]
  %v9 = vld [vmem:[%s0 + $0x8] sm:$0xff]
  %10 = vst [vmem:[%s1] sm:$0xff] %v8
  %11 = vst [vmem:[%s1 + $0x8] sm:$0xff] %v9
  // Predicated region
  $region6: #{net_forward.1} parent=0 // pred_check
    _
  $region7: #{net_forward.1} parent=0 // pred_check_branch
    %13 = sbr.rel (0) target = $region9
  $region8: #{net_forward.1} parent=0 // pred_region
    _
  $region9: #{net_forward.1} parent=0 // pred_fallthru
    _
  // Predicated region
  $region10: #{net_forward.1} parent=0 // pred_check
    _
  $region11: #{net_forward.1} parent=0 // pred_check_branch
    %15 = sbr.rel (0) target = $region13
  $region12: #{net_forward.1} parent=0 // pred_region
    _
  $region13: #{net_forward.1} parent=0 // pred_fallthru
    _

</llo_original>
